<compile_context>
chip_gen: v6e
topology: v6e:2x2x1
jax: 0.10.0
libtpu: 0.0.40
codegen_flags: <defaults>
</compile_context>

<pallas_src>
from functools import partial

import jax
import jax.numpy as jnp
from jax.experimental import pallas as pl
from jax.experimental.pallas import tpu as pltpu


PAD_IDX = 1      # RoBERTa convention: <s>=0, <pad>=1, </s>=2, <unk>=3
CLS_IDX = 0
SEP_IDX = 2

ACT_DTYPE = jnp.bfloat16        # residual / activation stream dtype (MXU bf16 path)

# Preferred tile sizes.  Large enough to approach the HBM roofline, small enough that
# double-buffered bf16 input tiles + the f32 accumulator stay well inside the scoped
# VMEM budget on v5e/v6e/v7x.
_TM = 512        # row tile for the plain (QKV) matmul
_TM_ROW = 256    # row tile for kernels that carry a full-hidden f32 accumulator / LN
_TN = 512
_TK = 512
_TQ = 256        # attention query-row tile

# Explicit scoped-VMEM request: above v5e's 16 MiB default, below v7x's 64 MiB physical.
_VMEM_LIMIT_BYTES = 48 * 1024 * 1024


def _pick(dim, pref, align=128):
    """Largest tile <= pref that is a multiple of `align` and divides `dim`.

    Returns the full dim when dim <= pref, or when no aligned divisor exists
    (small / irregular shapes -> single full block).
    """
    if dim <= pref:
        return dim
    t = (pref // align) * align
    while t >= align:
        if dim % t == 0:
            return t
        t -= align
    # TODO(synk): pad + masked epilogue instead of a full-dim fallback for large dims
    #             with no aligned divisor.
    return dim


def _heads_per_group(n_heads, head_dim):
    """Smallest head count whose packed lane width is 128-aligned (e.g. 2 for dh=64).

    Falls back to all heads for small (toy) hidden sizes where no 128-aligned grouping
    exists; the group block then spans the full last dim, which is always legal.
    """
    for g in range(1, n_heads + 1):
        if n_heads % g == 0 and (g * head_dim) % 128 == 0:
            return g
    return n_heads


def _cparams(*semantics):
    return pltpu.CompilerParams(dimension_semantics=semantics,
                                vmem_limit_bytes=_VMEM_LIMIT_BYTES)


# ----------------------------------------------------------------------------
# Pallas kernels
# ----------------------------------------------------------------------------
def _matmul_bias_kernel(x_ref, w_ref, b_ref, o_ref, acc_ref):
    """out = x @ w + b, K tiled.  x:[tm,tk] w:[tk,tn] b:[1,tn] -> o:[tm,tn]."""
    @pl.when(pl.program_id(2) == 0)
    def _():
        acc_ref[...] = jnp.zeros_like(acc_ref)

    acc_ref[...] += jnp.dot(x_ref[...], w_ref[...],
                            preferred_element_type=jnp.float32)

    @pl.when(pl.program_id(2) == pl.num_programs(2) - 1)
    def _():
        o_ref[...] = (acc_ref[...] + b_ref[...].astype(jnp.float32)).astype(o_ref.dtype)


def _matmul_bias_add_ln_kernel(x_ref, w_ref, b_ref, r_ref, g_ref, be_ref,
                               o_ref, acc_ref, *, eps):
    """out = LayerNorm(x @ w + b + residual) * gamma + beta, K tiled, N = full hidden."""
    @pl.when(pl.program_id(1) == 0)
    def _():
        acc_ref[...] = jnp.zeros_like(acc_ref)

    acc_ref[...] += jnp.dot(x_ref[...], w_ref[...],
                            preferred_element_type=jnp.float32)

    @pl.when(pl.program_id(1) == pl.num_programs(1) - 1)
    def _():
        acc = (acc_ref[...]
               + b_ref[...].astype(jnp.float32)
               + r_ref[...].astype(jnp.float32))
        mean = jnp.mean(acc, axis=-1, keepdims=True)
        centered = acc - mean
        var = jnp.mean(centered * centered, axis=-1, keepdims=True)
        normed = centered * jax.lax.rsqrt(var + eps)
        out = normed * g_ref[...].astype(jnp.float32) + be_ref[...].astype(jnp.float32)
        o_ref[...] = out.astype(o_ref.dtype)


def _ffn_fused_kernel(x_ref, w1_ref, b1_ref, w2_ref, b2_ref, r_ref, g_ref, be_ref,
                      o_ref, acc_ref, *, eps):
    """Fused FFN: acc += gelu(x @ w1_f + b1_f) @ w2_f; epilogue = LN(acc + b2 + residual).

    Gridded (row_tile, ffn_tile); the [tm, ffn_tile] intermediate never leaves VMEM.
    """
    @pl.when(pl.program_id(1) == 0)
    def _():
        acc_ref[...] = jnp.zeros_like(acc_ref)

    h = jnp.dot(x_ref[...], w1_ref[...], preferred_element_type=jnp.float32)
    # TODO(synk): HF RoBERTa uses exact erf-gelu; tanh-approx gelu used here.
    h = jax.nn.gelu(h + b1_ref[...].astype(jnp.float32), approximate=True)
    acc_ref[...] += jnp.dot(h.astype(x_ref.dtype), w2_ref[...],
                            preferred_element_type=jnp.float32)

    @pl.when(pl.program_id(1) == pl.num_programs(1) - 1)
    def _():
        acc = (acc_ref[...]
               + b2_ref[...].astype(jnp.float32)
               + r_ref[...].astype(jnp.float32))
        mean = jnp.mean(acc, axis=-1, keepdims=True)
        centered = acc - mean
        var = jnp.mean(centered * centered, axis=-1, keepdims=True)
        normed = centered * jax.lax.rsqrt(var + eps)
        out = normed * g_ref[...].astype(jnp.float32) + be_ref[...].astype(jnp.float32)
        o_ref[...] = out.astype(o_ref.dtype)


def _emb_add_ln_kernel(w_ref, p_ref, t_ref, g_ref, b_ref, o_ref, *, eps):
    """Fused embedding sum + LayerNorm: out = LN(word + pos + type) * gamma + beta."""
    x = (w_ref[...].astype(jnp.float32)
         + p_ref[...].astype(jnp.float32)
         + t_ref[...].astype(jnp.float32))          # type row broadcasts over rows
    mean = jnp.mean(x, axis=-1, keepdims=True)
    centered = x - mean
    var = jnp.mean(centered * centered, axis=-1, keepdims=True)
    normed = centered * jax.lax.rsqrt(var + eps)
    out = normed * g_ref[...].astype(jnp.float32) + b_ref[...].astype(jnp.float32)
    o_ref[...] = out.astype(o_ref.dtype)


def _attention_kernel(qkv_q_ref, qkv_kv_ref, bias_ref, o_ref, *,
                      heads_per_group, head_dim, scale):
    """Masked softmax attention for one (batch, head-group, q-tile) grid step.

    qkv_q_ref : [1, tq, 3*gdh]  packed q|k|v columns of this head group (q rows only used)
    qkv_kv_ref: [1, S,  3*gdh]  same columns, full sequence (k and v rows used)
    bias_ref  : [1, 1, S]       additive key mask (f32)
    o_ref     : [1, tq, gdh]    lane-dense context output for this group / q tile
    """
    gdh = heads_per_group * head_dim
    q = qkv_q_ref[0, :, 0:gdh] * scale                  # [tq, gdh] bf16, scaled once
    k = qkv_kv_ref[0, :, gdh:2 * gdh]                   # [S, gdh]
    v = qkv_kv_ref[0, :, 2 * gdh:3 * gdh]               # [S, gdh]
    tq = q.shape[0]
    s_len = k.shape[0]

    # Hoisted: broadcast the [1, S] additive key mask once per grid step (not per head).
    bias = jnp.broadcast_to(bias_ref[0].astype(jnp.float32), (tq, s_len))

    for h in range(heads_per_group):                    # small static unroll (2 at dh=64)
        sl = slice(h * head_dim, (h + 1) * head_dim)
        # Contract over head_dim directly -> no k transpose through the XLU.
        scores = jax.lax.dot_general(
            q[:, sl], k[:, sl], (((1,), (1,)), ((), ())),
            preferred_element_type=jnp.float32) + bias                 # [tq, S]
        m = jnp.max(scores, axis=-1, keepdims=True)
        p = jnp.exp(scores - m)
        denom = jnp.sum(p, axis=-1, keepdims=True)
        p = p * pl.reciprocal(denom, approx=True)
        ctx = jnp.dot(p.astype(v.dtype), v[:, sl],
                      preferred_element_type=jnp.float32)              # [tq, dh]
        o_ref[0, :, sl] = ctx.astype(o_ref.dtype)       # in-place per-head write, no concat
    # TODO(synk): for very long sequences also tile the KV axis with a flash-style online
    #             softmax; the current [tq, S] scores are already bounded but still O(S).


# ----------------------------------------------------------------------------
# Pallas wrappers
# ----------------------------------------------------------------------------
def pallas_matmul_bias(x, w, b):
    M, K = x.shape
    N = w.shape[1]
    tm = _pick(M, _TM, align=8)
    tn = _pick(N, _TN)
    tk = _pick(K, _TK)
    return pl.pallas_call(
        _matmul_bias_kernel,
        out_shape=jax.ShapeDtypeStruct((M, N), x.dtype),
        grid=(M // tm, N // tn, K // tk),
        in_specs=[
            pl.BlockSpec((tm, tk), lambda i, j, k: (i, k)),
            pl.BlockSpec((tk, tn), lambda i, j, k: (k, j)),
            pl.BlockSpec((1, tn), lambda i, j, k: (0, j)),
        ],
        out_specs=pl.BlockSpec((tm, tn), lambda i, j, k: (i, j)),
        scratch_shapes=[pltpu.VMEM((tm, tn), jnp.float32)],
        compiler_params=_cparams("parallel", "parallel", "arbitrary"),
    )(x, w, b.reshape(1, N))


def pallas_matmul_bias_add_ln(x, w, b, residual, gamma, beta, eps=1e-12):
    """Fused: LayerNorm(x @ w + b + residual) * gamma + beta.  Output N = full hidden."""
    M, K = x.shape
    N = w.shape[1]
    tm = _pick(M, _TM_ROW, align=8)
    tk = _pick(K, _TK)
    kernel = partial(_matmul_bias_add_ln_kernel, eps=eps)
    return pl.pallas_call(
        kernel,
        out_shape=jax.ShapeDtypeStruct((M, N), x.dtype),
        grid=(M // tm, K // tk),
        in_specs=[
            pl.BlockSpec((tm, tk), lambda i, k: (i, k)),
            pl.BlockSpec((tk, N), lambda i, k: (k, 0)),
            pl.BlockSpec((1, N), lambda i, k: (0, 0)),
            pl.BlockSpec((tm, N), lambda i, k: (i, 0)),
            pl.BlockSpec((1, N), lambda i, k: (0, 0)),
            pl.BlockSpec((1, N), lambda i, k: (0, 0)),
        ],
        out_specs=pl.BlockSpec((tm, N), lambda i, k: (i, 0)),
        scratch_shapes=[pltpu.VMEM((tm, N), jnp.float32)],
        compiler_params=_cparams("parallel", "arbitrary"),
    )(x, w, b.reshape(1, N), residual, gamma.reshape(1, N), beta.reshape(1, N))


def pallas_ffn_fused(x, w1, b1, w2, b2, gamma, beta, eps=1e-12):
    """Fused FFN + residual + LayerNorm; the [M, ffn] intermediate never hits HBM."""
    M, H = x.shape
    F = w1.shape[1]
    tm = _pick(M, _TM_ROW, align=8)
    tf = _pick(F, _TN)
    kernel = partial(_ffn_fused_kernel, eps=eps)
    return pl.pallas_call(
        kernel,
        out_shape=jax.ShapeDtypeStruct((M, H), x.dtype),
        grid=(M // tm, F // tf),
        in_specs=[
            pl.BlockSpec((tm, H), lambda i, f: (i, 0)),
            pl.BlockSpec((H, tf), lambda i, f: (0, f)),
            pl.BlockSpec((1, tf), lambda i, f: (0, f)),
            pl.BlockSpec((tf, H), lambda i, f: (f, 0)),
            pl.BlockSpec((1, H), lambda i, f: (0, 0)),
            pl.BlockSpec((tm, H), lambda i, f: (i, 0)),
            pl.BlockSpec((1, H), lambda i, f: (0, 0)),
            pl.BlockSpec((1, H), lambda i, f: (0, 0)),
        ],
        out_specs=pl.BlockSpec((tm, H), lambda i, f: (i, 0)),
        scratch_shapes=[pltpu.VMEM((tm, H), jnp.float32)],
        compiler_params=_cparams("parallel", "arbitrary"),
    )(x, w1, b1.reshape(1, F), w2, b2.reshape(1, H),
      x if False else x, gamma.reshape(1, H), beta.reshape(1, H)) if False else pl.pallas_call(
        kernel,
        out_shape=jax.ShapeDtypeStruct((M, H), x.dtype),
        grid=(M // tm, F // tf),
        in_specs=[
            pl.BlockSpec((tm, H), lambda i, f: (i, 0)),
            pl.BlockSpec((H, tf), lambda i, f: (0, f)),
            pl.BlockSpec((1, tf), lambda i, f: (0, f)),
            pl.BlockSpec((tf, H), lambda i, f: (f, 0)),
            pl.BlockSpec((1, H), lambda i, f: (0, 0)),
            pl.BlockSpec((tm, H), lambda i, f: (i, 0)),
            pl.BlockSpec((1, H), lambda i, f: (0, 0)),
            pl.BlockSpec((1, H), lambda i, f: (0, 0)),
        ],
        out_specs=pl.BlockSpec((tm, H), lambda i, f: (i, 0)),
        scratch_shapes=[pltpu.VMEM((tm, H), jnp.float32)],
        compiler_params=_cparams("parallel", "arbitrary"),
    )(x, w1, b1.reshape(1, F), w2, b2.reshape(1, H),
      x, gamma.reshape(1, H), beta.reshape(1, H))


def pallas_emb_add_ln(word_slab, pos_slab, type_row, gamma, beta, out_dtype, eps=1e-12):
    M, H = word_slab.shape
    tm = _pick(M, _TM_ROW, align=8)
    kernel = partial(_emb_add_ln_kernel, eps=eps)
    return pl.pallas_call(
        kernel,
        out_shape=jax.ShapeDtypeStruct((M, H), out_dtype),
        grid=(M // tm,),
        in_specs=[
            pl.BlockSpec((tm, H), lambda i: (i, 0)),
            pl.BlockSpec((tm, H), lambda i: (i, 0)),
            pl.BlockSpec((1, H), lambda i: (0, 0)),
            pl.BlockSpec((1, H), lambda i: (0, 0)),
            pl.BlockSpec((1, H), lambda i: (0, 0)),
        ],
        out_specs=pl.BlockSpec((tm, H), lambda i: (i, 0)),
        compiler_params=_cparams("parallel"),
    )(word_slab, pos_slab, type_row.reshape(1, H), gamma.reshape(1, H), beta.reshape(1, H))


def pallas_attention(qkv, key_bias, n_heads, head_dim, scale, out_dtype):
    """qkv: [B, S, 3H] packed per head-group as q|k|v; key_bias: [B, 1, S] -> [B, S, H]."""
    B, S, _ = qkv.shape
    H = n_heads * head_dim
    gh = _heads_per_group(n_heads, head_dim)
    n_groups = n_heads // gh
    gdh = gh * head_dim
    tq = _pick(S, _TQ, align=8)
    kernel = partial(_attention_kernel, heads_per_group=gh, head_dim=head_dim, scale=scale)
    return pl.pallas_call(
        kernel,
        out_shape=jax.ShapeDtypeStruct((B, S, H), out_dtype),
        grid=(B, n_groups, S // tq),
        in_specs=[
            # q rows of this group / q tile (k/v lanes of these rows ride along; small).
            pl.BlockSpec((1, tq, 3 * gdh), lambda b, g, qi: (b, qi, g)),
            # full-sequence k/v of this group; block index is qi-invariant -> fetched once
            # per (b, g) by the pipeline.
            pl.BlockSpec((1, S, 3 * gdh), lambda b, g, qi: (b, 0, g)),
            pl.BlockSpec((1, 1, S), lambda b, g, qi: (b, 0, 0)),
        ],
        out_specs=pl.BlockSpec((1, tq, gdh), lambda b, g, qi: (b, qi, g)),
        compiler_params=_cparams("parallel", "parallel", "parallel"),
    )(qkv, qkv, key_bias)


# ----------------------------------------------------------------------------
# Synthetic RoBERTa-style encoder built on the Pallas kernels
# ----------------------------------------------------------------------------
def init_params(key, vocab_size, hidden, ffn, n_layers, n_heads, max_pos):
    dh = hidden // n_heads
    gh = _heads_per_group(n_heads, dh)
    n_groups = n_heads // gh
    gdh = gh * dh

    def dense(k, fan_in, fan_out):
        kw, kb = jax.random.split(k)
        w = (0.02 * jax.random.normal(kw, (fan_in, fan_out), jnp.float32)).astype(ACT_DTYPE)
        b = 0.02 * jax.random.normal(kb, (fan_out,), jnp.float32)   # bias stays f32
        return w, b

    keys = jax.random.split(key, 4 + n_layers)
    params = {
        "word_emb": 0.02 * jax.random.normal(keys[0], (vocab_size, hidden), jnp.float32),
        "pos_emb": 0.02 * jax.random.normal(keys[1], (max_pos, hidden), jnp.float32),
        "type_emb": 0.02 * jax.random.normal(keys[2], (1, hidden), jnp.float32),
        "emb_ln_g": jnp.ones((hidden,), jnp.float32),
        "emb_ln_b": jnp.zeros((hidden,), jnp.float32),
        "layers": [],
    }
    for li in range(n_layers):
        lk = jax.random.split(keys[4 + li], 8)
        wq, bq = dense(lk[0], hidden, hidden)
        wk, bk = dense(lk[1], hidden, hidden)
        wv, bv = dense(lk[2], hidden, hidden)
        wo, bo = dense(lk[3], hidden, hidden)
        w1, b1 = dense(lk[4], hidden, ffn)
        w2, b2 = dense(lk[5], ffn, hidden)
        # Fused QKV projection, columns re-packed per head group as [q_g | k_g | v_g] so the
        # attention BlockSpec can deliver a 128-lane-aligned per-group slice directly.
        wq_g = wq.reshape(hidden, n_groups, gdh)
        wk_g = wk.reshape(hidden, n_groups, gdh)
        wv_g = wv.reshape(hidden, n_groups, gdh)
        w_qkv = jnp.concatenate([wq_g, wk_g, wv_g], axis=-1).reshape(hidden, 3 * hidden)
        b_qkv = jnp.concatenate([bq.reshape(n_groups, gdh),
                                 bk.reshape(n_groups, gdh),
                                 bv.reshape(n_groups, gdh)], axis=-1).reshape(3 * hidden)
        params["layers"].append({
            "w_qkv": w_qkv, "b_qkv": b_qkv,            # [H, 3H] bf16 / [3H] f32
            "wo": wo, "bo": bo, "w1": w1, "b1": b1, "w2": w2, "b2": b2,
            "ln1_g": jnp.ones((hidden,), jnp.float32),
            "ln1_b": jnp.zeros((hidden,), jnp.float32),
            "ln2_g": jnp.ones((hidden,), jnp.float32),
            "ln2_b": jnp.zeros((hidden,), jnp.float32),
        })
    wp, bp = dense(keys[3], hidden, hidden)
    params["pool_w"] = wp
    params["pool_b"] = bp
    return params


def encoder_forward(params, word_pieces, n_heads):
    """Returns (list of per-layer hidden states [B,S,H] bf16, pooled_cls [B,H] bf16)."""
    B, S = word_pieces.shape
    H = params["word_emb"].shape[1]
    dh = H // n_heads
    scale = 1.0 / (dh ** 0.5)

    attn_mask = (word_pieces != PAD_IDX)                               # [B, S] bool
    mask_i = attn_mask.astype(jnp.int32)
    # RoBERTa position ids: padding stays at padding_idx, others cumsum+pad_idx.
    position_ids = jnp.cumsum(mask_i, axis=1) * mask_i + PAD_IDX       # [B, S]

    word_slab = jnp.take(params["word_emb"], word_pieces.reshape(-1), axis=0)   # [M,H] f32
    pos_slab = jnp.take(params["pos_emb"], position_ids.reshape(-1), axis=0)    # [M,H] f32
    # fused word+pos+type add + LayerNorm (no [M,H] f32 sum materialized in HBM)
    x = pallas_emb_add_ln(word_slab, pos_slab, params["type_emb"],
                          params["emb_ln_g"], params["emb_ln_b"],
                          out_dtype=ACT_DTYPE)                          # [B*S, H] bf16

    # additive key mask, shared across heads: 0 for real tokens, -1e4 for pad (f32)
    key_bias = ((1.0 - attn_mask.astype(jnp.float32)) * -10000.0)[:, None, :]  # [B,1,S]

    all_layers = []
    for lp in params["layers"]:
        # --- self-attention (fused QKV projection, per-head-group grid) ---
        qkv = pallas_matmul_bias(x, lp["w_qkv"], lp["b_qkv"])          # [B*S, 3H] bf16
        ctx = pallas_attention(qkv.reshape(B, S, 3 * H), key_bias,
                               n_heads, dh, scale, ACT_DTYPE)          # [B, S, H]
        ctx = ctx.reshape(B * S, H)
        # output projection with fused residual-add + LayerNorm epilogue
        x1 = pallas_matmul_bias_add_ln(ctx, lp["wo"], lp["bo"],
                                       x, lp["ln1_g"], lp["ln1_b"])

        # --- fused FFN (up-proj + GELU + down-proj + residual + LayerNorm) ---
        x = pallas_ffn_fused(x1, lp["w1"], lp["b1"], lp["w2"], lp["b2"],
                             lp["ln2_g"], lp["ln2_b"])

        all_layers.append(x.reshape(B, S, H))

    # pooler: tanh(dense(CLS token of last layer)) — a [B,H]x[H,H] matmul, left to XLA
    # (a Pallas launch for <8 sublane rows is pure fixed overhead).
    cls_h = all_layers[-1][:, 0, :].astype(jnp.float32)                # [B, H]
    pooled = jnp.tanh(jnp.dot(cls_h, params["pool_w"].astype(jnp.float32),
                              preferred_element_type=jnp.float32) + params["pool_b"])
    return all_layers, pooled.astype(ACT_DTYPE)


def wordpiece_roberta_forward(params, word_pieces, layers=(-1,), pooled_cls=False,
                              n_heads=4):
    """Mirrors _WordPieceRobertaModel.forward: -> [len(layers), B, S, H] f32."""
    B, S = word_pieces.shape
    roberta_outputs, pooled = encoder_forward(params, word_pieces, n_heads)
    selected = []
    for l in layers:
        out = roberta_outputs[l]                                       # [B, S, H]
        # Faithful to the original quirky check: `len(roberta_output)` on a
        # tensor is its batch dim, so the condition is l in (B-1, -1).
        if pooled_cls and l in (B - 1, -1):
            out = out.at[:, 0].set(pooled.astype(out.dtype))
        selected.append(out)
    return jnp.stack(selected, axis=0).astype(jnp.float32)             # [L, B, S, H]


# ----------------------------------------------------------------------------
# Demo
# ----------------------------------------------------------------------------
if __name__ == "__main__":
    B, S = 2, 8
    HIDDEN, FFN, N_LAYERS, N_HEADS = 32, 64, 2, 4
    VOCAB = 50
    MAX_POS = S + PAD_IDX + 2

    key = jax.random.PRNGKey(0)
    pkey, tkey = jax.random.split(key)
    params = init_params(pkey, VOCAB, HIDDEN, FFN, N_LAYERS, N_HEADS, MAX_POS)

    # Build word-piece ids: <s> tok ... tok </s> <pad> ...
    body = jax.random.randint(tkey, (B, S), 4, VOCAB, dtype=jnp.int32)
    word_pieces = body.at[:, 0].set(CLS_IDX)
    word_pieces = word_pieces.at[0, 5].set(SEP_IDX)
    word_pieces = word_pieces.at[0, 6:].set(PAD_IDX)
    word_pieces = word_pieces.at[1, 7].set(SEP_IDX)

    out = wordpiece_roberta_forward(params, word_pieces, layers=(-1,),
                                    pooled_cls=False, n_heads=N_HEADS)
    out = jax.block_until_ready(out)
    assert out.shape == (1, B, S, HIDDEN), out.shape
    assert jnp.all(jnp.isfinite(out))
    print("KERNEL_OK")
</pallas_src>

<mosaic_0001>
module attributes {stable_mosaic.version = 11 : i64} {
  func.func @_emb_add_ln_kernel(%arg0: i32, %arg1: memref<16x32xf32, #tpu.memory_space<vmem>>, %arg2: memref<16x32xf32, #tpu.memory_space<vmem>>, %arg3: memref<1x32xf32, #tpu.memory_space<vmem>>, %arg4: memref<1x32xf32, #tpu.memory_space<vmem>>, %arg5: memref<1x32xf32, #tpu.memory_space<vmem>>, %arg6: memref<16x32xbf16, #tpu.memory_space<vmem>>) attributes {dimension_semantics = [#tpu.dimension_semantics<parallel>], iteration_bounds = array<i64: 1>, scalar_prefetch = 0 : i64, scratch_operands = 0 : i64, tpu.core_type = #tpu.core_type<tc>, window_params = [{transform_indices = @transform_0, window_bounds = array<i64: 16, 32>}, {transform_indices = @transform_1, window_bounds = array<i64: 16, 32>}, {pipeline_mode = #tpu.pipeline_mode<synchronous>, transform_indices = @transform_2, window_bounds = array<i64: 1, 32>}, {pipeline_mode = #tpu.pipeline_mode<synchronous>, transform_indices = @transform_3, window_bounds = array<i64: 1, 32>}, {pipeline_mode = #tpu.pipeline_mode<synchronous>, transform_indices = @transform_4, window_bounds = array<i64: 1, 32>}, {transform_indices = @transform_5, window_bounds = array<i64: 16, 32>}]} {
    %c0 = arith.constant 0 : index
    %c0_0 = arith.constant 0 : index
    %0 = vector.load %arg1[%c0, %c0_0] : memref<16x32xf32, #tpu.memory_space<vmem>>, vector<16x32xf32>
    %c0_1 = arith.constant 0 : index
    %c0_2 = arith.constant 0 : index
    %1 = vector.load %arg2[%c0_1, %c0_2] : memref<16x32xf32, #tpu.memory_space<vmem>>, vector<16x32xf32>
    %2 = arith.addf %0, %1 : vector<16x32xf32>
    %c0_3 = arith.constant 0 : index
    %c0_4 = arith.constant 0 : index
    %3 = vector.load %arg3[%c0_3, %c0_4] : memref<1x32xf32, #tpu.memory_space<vmem>>, vector<1x32xf32>
    %4 = vector.broadcast %3 : vector<1x32xf32> to vector<16x32xf32>
    %5 = arith.addf %2, %4 : vector<16x32xf32>
    %cst = arith.constant dense<0.000000e+00> : vector<16xf32>
    %6 = vector.multi_reduction <add>, %5, %cst [1] : vector<16x32xf32> to vector<16xf32>
    %7 = vector.shape_cast %6 : vector<16xf32> to vector<16x1xf32>
    %cst_5 = arith.constant 3.200000e+01 : f32
    %8 = vector.broadcast %cst_5 : f32 to vector<16x1xf32>
    %9 = arith.divf %7, %8 : vector<16x1xf32>
    %10 = vector.broadcast %9 : vector<16x1xf32> to vector<16x32xf32>
    %11 = arith.subf %5, %10 : vector<16x32xf32>
    %12 = arith.mulf %11, %11 : vector<16x32xf32>
    %cst_6 = arith.constant dense<0.000000e+00> : vector<16xf32>
    %13 = vector.multi_reduction <add>, %12, %cst_6 [1] : vector<16x32xf32> to vector<16xf32>
    %14 = vector.shape_cast %13 : vector<16xf32> to vector<16x1xf32>
    %cst_7 = arith.constant 3.200000e+01 : f32
    %15 = vector.broadcast %cst_7 : f32 to vector<16x1xf32>
    %16 = arith.divf %14, %15 : vector<16x1xf32>
    %cst_8 = arith.constant 9.99999996E-13 : f32
    %17 = vector.broadcast %cst_8 : f32 to vector<16x1xf32>
    %18 = arith.addf %16, %17 : vector<16x1xf32>
    %19 = math.rsqrt %18 : vector<16x1xf32>
    %20 = vector.broadcast %19 : vector<16x1xf32> to vector<16x32xf32>
    %21 = arith.mulf %11, %20 : vector<16x32xf32>
    %c0_9 = arith.constant 0 : index
    %c0_10 = arith.constant 0 : index
    %22 = vector.load %arg4[%c0_9, %c0_10] : memref<1x32xf32, #tpu.memory_space<vmem>>, vector<1x32xf32>
    %23 = vector.broadcast %22 : vector<1x32xf32> to vector<16x32xf32>
    %24 = arith.mulf %21, %23 : vector<16x32xf32>
    %c0_11 = arith.constant 0 : index
    %c0_12 = arith.constant 0 : index
    %25 = vector.load %arg5[%c0_11, %c0_12] : memref<1x32xf32, #tpu.memory_space<vmem>>, vector<1x32xf32>
    %26 = vector.broadcast %25 : vector<1x32xf32> to vector<16x32xf32>
    %27 = arith.addf %24, %26 : vector<16x32xf32>
    %28 = arith.truncf %27 : vector<16x32xf32> to vector<16x32xbf16>
    %c0_13 = arith.constant 0 : index
    %c0_14 = arith.constant 0 : index
    %29 = vector.load %arg6[%c0_13, %c0_14] : memref<16x32xbf16, #tpu.memory_space<vmem>>, vector<16x32xbf16>
    tpu.vector_store %arg6[%c0_13, %c0_14], %28 {strides = array<i32>} : memref<16x32xbf16, #tpu.memory_space<vmem>>, vector<16x32xbf16>,
    return
  }
  func.func @transform_0(%arg0: i32) -> (i32, i32) {
    %c0_i32 = arith.constant 0 : i32
    %c0_i32_0 = arith.constant 0 : i32
    return %arg0, %c0_i32 : i32, i32
  }
  func.func @transform_1(%arg0: i32) -> (i32, i32) {
    %c0_i32 = arith.constant 0 : i32
    %c0_i32_0 = arith.constant 0 : i32
    return %arg0, %c0_i32 : i32, i32
  }
  func.func @transform_2(%arg0: i32) -> (i32, i32) {
    %c0_i32 = arith.constant 0 : i32
    %c0_i32_0 = arith.constant 0 : i32
    %c0_i32_1 = arith.constant 0 : i32
    return %c0_i32, %c0_i32_0 : i32, i32
  }
  func.func @transform_3(%arg0: i32) -> (i32, i32) {
    %c0_i32 = arith.constant 0 : i32
    %c0_i32_0 = arith.constant 0 : i32
    %c0_i32_1 = arith.constant 0 : i32
    return %c0_i32, %c0_i32_0 : i32, i32
  }
  func.func @transform_4(%arg0: i32) -> (i32, i32) {
    %c0_i32 = arith.constant 0 : i32
    %c0_i32_0 = arith.constant 0 : i32
    %c0_i32_1 = arith.constant 0 : i32
    return %c0_i32, %c0_i32_0 : i32, i32
  }
  func.func @transform_5(%arg0: i32) -> (i32, i32) {
    %c0_i32 = arith.constant 0 : i32
    %c0_i32_0 = arith.constant 0 : i32
    return %arg0, %c0_i32 : i32, i32
  }
}

</mosaic_0001>

<llo_original>
// kernel: tpu_custom_call.1
$region0: #{tpu_custom_call.1}
  #allocation0 [shape = 'u32[]', space=smem, size = 0x4, offset = 0x4, fixed_abs, tag = 'smem constant byte address 0x4 - core index']
  #allocation1 [shape = 'u32[144,128]{1,0:T(1,128)}', space=vmem, size = 0x12000, scoped, tag = 'internal scratch']
  %s0 = inlined_call_operand.hbm [shape: f32[16,32], index: 0, kind: input, shape index: {}]
  %s1 = inlined_call_operand.hbm [shape: f32[16,32], index: 1, kind: input, shape index: {}]
  %s2 = inlined_call_operand.vmem [shape: f32[1,32], index: 2, kind: input, shape index: {}]
  %s3 = inlined_call_operand.vmem [shape: f32[1,32], index: 3, kind: input, shape index: {}]
  %s4 = inlined_call_operand.vmem [shape: f32[1,32], index: 4, kind: input, shape index: {}]
  %s5 = inlined_call_operand.hbm [shape: bf16[16,32], index: 5, kind: output, shape index: {}]
  %s6 = sld [smem:[#allocation0]]
  $region38: #{tpu_custom_call.1} parent=0
    _
  %s8 = ssub.s32 1, %s6
  %s9 = scalar_select 0, %s8, %s6
  $region1: #{tpu_custom_call.1} parent=0
    #allocation2 [shape = 'u8[8192]{0}', space=vmem, size = 0x2000, scoped, tag = 'input window, operand 0, single buffered']
    #allocation3 [shape = 's32[1]{0}', space=sflag, size = 0x4, scoped, tag = 'scoped memory for tpu_custom_call.1']
    #allocation4 [shape = 's32[1]{0}', space=sflag, size = 0x4, scoped, tag = 'scoped memory for tpu_custom_call.1']
    #allocation5 [shape = 'u8[8192]{0}', space=vmem, size = 0x2000, scoped, tag = 'input window, operand 1, single buffered']
    #allocation6 [shape = 's32[1]{0}', space=sflag, size = 0x4, scoped, tag = 'scoped memory for tpu_custom_call.1']
    #allocation7 [shape = 'u8[4096]{0}', space=vmem, size = 0x1000, scoped, tag = 'output window, operand 0, single buffered']
    %10 = vsyncpa [#allocation3], 0
    %11 = vsyncpa [#allocation6], 0
    %12 = vsyncpa [#allocation4], 0
    // Predicated region
    $region2: #{tpu_custom_call.1} parent=1 // pred_check
      _
    $region3: #{tpu_custom_call.1} parent=1 // pred_check_branch
      %14 = sbr.rel (0) target = $region5
    $region4: #{tpu_custom_call.1} parent=1 // pred_region
      %s16 = ssub.s32 256, 256
      %17 = vsyncadd [#allocation3], %s16
      %s18 = sshll.u32 [#allocation2], 4
      %s19 = int_to_ptr.vmem [resolvable:$true] %s18
      %24 = dma.hbm_to_vmem [thread:$0]  %s0, 256, %s19, [#allocation3], 128, 128, 8
    $region5: #{tpu_custom_call.1} parent=1 // pred_fallthru
      _
    // Predicated region
    $region6: #{tpu_custom_call.1} parent=1 // pred_check
      _
    $region7: #{tpu_custom_call.1} parent=1 // pred_check_branch
      %26 = sbr.rel (0) target = $region9
    $region8: #{tpu_custom_call.1} parent=1 // pred_region
      %s28 = ssub.s32 256, 256
      %29 = vsyncadd [#allocation6], %s28
      %s30 = sshll.u32 [#allocation5], 4
      %s31 = int_to_ptr.vmem [resolvable:$true] %s30
      %36 = dma.hbm_to_vmem [thread:$0]  %s1, 256, %s31, [#allocation6], 128, 128, 8
    $region9: #{tpu_custom_call.1} parent=1 // pred_fallthru
      _
    // Predicated region
    $region10: #{tpu_custom_call.1} parent=1 // pred_check
      _
    $region11: #{tpu_custom_call.1} parent=1 // pred_check_branch
      %38 = sbr.rel (0) target = $region13
    $region12: #{tpu_custom_call.1} parent=1 // pred_region
      _
    $region13: #{tpu_custom_call.1} parent=1 // pred_fallthru
      _
    // Predicated region
    $region14: #{tpu_custom_call.1} parent=1 // pred_check
      _
    $region15: #{tpu_custom_call.1} parent=1 // pred_check_branch
      %40 = sbr.rel (0) target = $region17
    $region16: #{tpu_custom_call.1} parent=1 // pred_region
      _
    $region17: #{tpu_custom_call.1} parent=1 // pred_fallthru
      _
    // Predicated region
    $region18: #{tpu_custom_call.1} parent=1 // pred_check
      _
    $region19: #{tpu_custom_call.1} parent=1 // pred_check_branch
      %42 = sbr.rel (0) target = $region21
    $region20: #{tpu_custom_call.1} parent=1 // pred_region
      _
    $region21: #{tpu_custom_call.1} parent=1 // pred_fallthru
      _
    // Predicated region
    $region22: #{tpu_custom_call.1} parent=1 // pred_check
      _
    $region23: #{tpu_custom_call.1} parent=1 // pred_check_branch
      %44 = sbr.rel (0) target = $region25
    $region24: #{tpu_custom_call.1} parent=1 // pred_region
      %45 = dma.done [#allocation3], 256
    $region25: #{tpu_custom_call.1} parent=1 // pred_fallthru
      _
    // Predicated region
    $region26: #{tpu_custom_call.1} parent=1 // pred_check
      _
    $region27: #{tpu_custom_call.1} parent=1 // pred_check_branch
      %47 = sbr.rel (0) target = $region29
    $region28: #{tpu_custom_call.1} parent=1 // pred_region
      %48 = dma.done [#allocation6], 256
    $region29: #{tpu_custom_call.1} parent=1 // pred_fallthru
      _
    %v49 = vld [vmem:[#allocation2] sm:$0xff]
    %v50 = vld [vmem:[#allocation2 + $0x8] sm:$0xff]
    %v51 = vld [vmem:[#allocation5] sm:$0xff]
    %v52 = vld [vmem:[#allocation5 + $0x8] sm:$0xff]
    %v53 = vadd.f32 %v49, %v51
    %v54 = vadd.f32 %v50, %v52
    %v55 = vld [vmem:[%s2] sm:$0x1]
    %v57 = vlaneseq
    %v58 = vshrl.u32 %v57, 7
    %v59 = vsub.s32 0, %v58
    %v60 = vrot.slane %v55, %v59
    %v62 = vadd.f32 %v53, %v60
    %v63 = vadd.f32 %v54, %v60
    %vm64 = vcmask 261120
    %v65 = vsel %vm64, %v62, 0.0
    %66 = vadd.xlane.f32.xlu0 %v65
    %v67 = vpop.xlane.xlu0 %66
    %v68 = vsel %vm64, %v63, 0.0
    %69 = vadd.xlane.f32.xlu0 %v68
    %v70 = vpop.xlane.xlu0 %69
    %v71 = vrcp.pop 32.0
    %v72 = vmul.f32 %v67, %v71
    %v73 = vmul.f32 %v70, %v71
    %v74 = vsub.f32 %v62, %v72
    %v75 = vsub.f32 %v63, %v73
    %v76 = vmul.f32 %v74, %v74
    %v77 = vmul.f32 %v75, %v75
    %v78 = vsel %vm64, %v76, 0.0
    %79 = vadd.xlane.f32.xlu0 %v78
    %v80 = vpop.xlane.xlu0 %79
    %v81 = vsel %vm64, %v77, 0.0
    %82 = vadd.xlane.f32.xlu0 %v81
    %v83 = vpop.xlane.xlu0 %82
    %v84 = vmul.f32 %v80, %v71
    %v85 = vmul.f32 %v83, %v71
    %v86 = vadd.f32 %v84, 1e-12
    %v87 = vadd.f32 %v85, 1e-12
    %v88 = vrsqrt.pop %v86
    %v89 = vrsqrt.pop %v87
    %v90 = vmul.f32 %v74, %v88
    %v91 = vmul.f32 %v75, %v89
    %v92 = vld [vmem:[%s3] sm:$0x1]
    %v94 = vlaneseq
    %v95 = vshrl.u32 %v94, 7
    %v96 = vsub.s32 0, %v95
    %v97 = vrot.slane %v92, %v96
    %v99 = vmul.f32 %v90, %v97
    %v100 = vmul.f32 %v91, %v97
    %v101 = vld [vmem:[%s4] sm:$0x1]
    %v103 = vlaneseq
    %v104 = vshrl.u32 %v103, 7
    %v105 = vsub.s32 0, %v104
    %v106 = vrot.slane %v101, %v105
    %v108 = vadd.f32 %v99, %v106
    %v109 = vadd.f32 %v100, %v106
    %v110 = vpack.c.bf16 %v109, %v108
    %v112 = vunpack.c.l.b16 %v110
    %v113 = vunpack.c.h.b16 %v110
    %v114 = vpack.c.b16 %v112, %v112
    %v115 = vpack.c.b16 %v113, %v113
    %vm118 = vcmask 257024
    %119 = vst.msk [vmem:[#allocation7] sm:$0xf] %vm118, %v114
    %120 = vst.msk [vmem:[#allocation7 + $0x4] sm:$0xf] %vm118, %v115
    // Predicated region
    $region30: #{tpu_custom_call.1} parent=1 // pred_check
      _
    $region31: #{tpu_custom_call.1} parent=1 // pred_check_branch
      %122 = sbr.rel (0) target = $region33
    $region32: #{tpu_custom_call.1} parent=1 // pred_region
      %s124 = ssub.s32 128, 128
      %125 = vsyncadd [#allocation4], %s124
      %s126 = sshll.u32 [#allocation7], 4
      %s127 = int_to_ptr.vmem [resolvable:$true] %s126
      %132 = dma.vmem_to_hbm [thread:$0]  %s127, 128, %s5, [#allocation4], 64, 64, 4
    $region33: #{tpu_custom_call.1} parent=1 // pred_fallthru
      _
    // Predicated region
    $region34: #{tpu_custom_call.1} parent=1 // pred_check
      _
    $region35: #{tpu_custom_call.1} parent=1 // pred_check_branch
      %134 = sbr.rel (0) target = $region37
    $region36: #{tpu_custom_call.1} parent=1 // pred_region
      %135 = dma.done [#allocation4], 128
    $region37: #{tpu_custom_call.1} parent=1 // pred_fallthru
      _
    %136 = vsyncpa [#allocation3], 1
    %137 = vsyncpa [#allocation6], 1
    %138 = vsyncpa [#allocation4], 1

</llo_original>
